<compile_context>
chip_gen: v7x
topology: tpu7x:2x2x1
jax: 0.10.0
libtpu: 0.0.40
codegen_flags: <defaults>
</compile_context>

<pallas_src>
import functools

import jax
import jax.numpy as jnp
from jax.experimental import pallas as pl
from jax.experimental.pallas import tpu as pltpu


_VMEM_LIMIT_BYTES = 32 * 1024 * 1024   # explicit scoped-VMEM limit (v7x-safe)
_VMEM_TILE_BUDGET = 8 * 1024 * 1024    # budget for the double-buffered blocks


def _round_up(x, m):
    return -(-x // m) * m


@functools.lru_cache(maxsize=None)
def _resolve_roll_shift(c: int):
    """Shift `s` such that pltpu.roll(x, s, axis=1)[:, j] == x[:, (j + 1) % c].

    The review asked for pltpu.roll instead of slice+concatenate but flagged
    the rotation direction as a correctness concern.  Rather than trusting a
    sign convention, probe it once (per channel count) on a tiny tile and pick
    the shift that reproduces torch.cat((pred[:, 1:], pred[:, :1]), 1).
    Returns None if pltpu.roll is unusable for this shape class; callers then
    fall back to the slice+concat formulation (known to lower correctly).
    """
    if c < 2:
        return 0
    try:
        def probe_kernel(x_ref, o_ref):
            o_ref[...] = pltpu.roll(x_ref[...], 1, axis=1)

        row = jnp.arange(c, dtype=jnp.float32)
        x = jnp.broadcast_to(row[None, :], (8, c))
        out = pl.pallas_call(
            probe_kernel,
            out_shape=jax.ShapeDtypeStruct((8, c), jnp.float32),
        )(x)
        first = float(out[0, 0])
    except Exception:
        return None                 # roll not lowerable here -> concat fallback
    if first == float(c - 1):       # np.roll convention: out[j] = x[(j - s) % c]
        return c - 1
    if first == 1.0:                # opposite convention: out[j] = x[(j + s) % c]
        return 1
    return None                     # unexpected result -> use the safe path


def _next_along_c(x, c, shift):
    """pred_last[:, j] = pred[:, (j + 1) % c]  (matches the torch cat)."""
    if c < 2 or shift == 0:
        return x
    if shift is None:
        # Fallback: lane-slice + concatenate (proven, just slower on the XLU).
        return jnp.concatenate([x[:, 1:], x[:, :1]], axis=1)
    return pltpu.roll(x, shift, axis=1)


def _rows_kernel(pred_ref, out_ref, *, c, shift, inv_c):
    """Per-row mean of |x - x_next| / x_next for one (row_tile, C) block."""
    x = pred_ref[...].astype(jnp.float32)
    x_next = _next_along_c(x, c, shift)
    d = jnp.abs(x - x_next) * pl.reciprocal(x_next, approx=False)
    out_ref[...] = jnp.sum(d, axis=1, keepdims=True) * inv_c


def _fused_sum_kernel(pred_ref, out_ref, *, c, shift, inv_c):
    """Accumulates the sum over rows of the per-row means into a (1, 1) output."""
    @pl.when(pl.program_id(0) == 0)
    def _init():
        out_ref[...] = jnp.zeros_like(out_ref)

    x = pred_ref[...].astype(jnp.float32)
    x_next = _next_along_c(x, c, shift)
    d = jnp.abs(x - x_next) * pl.reciprocal(x_next, approx=False)
    row_sums = jnp.sum(d, axis=1, keepdims=True)            # (row_tile, 1)
    out_ref[...] += jnp.sum(row_sums, axis=0, keepdims=True) * inv_c


def _choose_row_tile(n, c):
    """Largest row tile that keeps double-buffered blocks within budget.

    A (rt, C) f32 block occupies rt * max(round_up(C,128), 128) * 4 bytes in
    VMEM (lanes pad to 128); the (rt, 1) output block pads to 128 lanes too.
    """
    lane_c = max(128, _round_up(c, 128))
    per_row_bytes = (lane_c + 128) * 4
    rt = _VMEM_TILE_BUDGET // (2 * per_row_bytes)   # x2: double buffering
    rt -= rt % 16                                   # 16: bf16 sublane packing
    rt = max(16, rt)
    # Never exceed the (16-rounded) row count: tiny inputs get a single tile,
    # large inputs keep a multi-step grid (useful for v7x 2-TC sharding).
    return min(rt, _round_up(n, 16))


def _prepare(pred):
    n, c = pred.shape
    rt = _choose_row_tile(n, c)
    n_pad = _round_up(n, rt)
    if n_pad != n:
        # Pad rows with 1.0: |1 - 1| / 1 == 0, so padding contributes nothing.
        pred = jnp.pad(pred, ((0, n_pad - n), (0, 0)), constant_values=1.0)
    return pred, n, c, rt, n_pad


def _difference_loss_rows(pred):
    """Per-row loss (== torch difference_loss before the weighted reduction)."""
    pred, n, c, rt, n_pad = _prepare(pred)
    kernel = functools.partial(
        _rows_kernel, c=c, shift=_resolve_roll_shift(c), inv_c=1.0 / c)
    out = pl.pallas_call(
        kernel,
        out_shape=jax.ShapeDtypeStruct((n_pad, 1), jnp.float32),
        grid=(n_pad // rt,),
        in_specs=[pl.BlockSpec((rt, c), lambda i: (i, 0))],
        out_specs=pl.BlockSpec((rt, 1), lambda i: (i, 0)),
        compiler_params=pltpu.CompilerParams(
            dimension_semantics=("parallel",),
            vmem_limit_bytes=_VMEM_LIMIT_BYTES),
    )(pred)
    return out[:n, 0]


def _difference_loss_total(pred):
    """Fused scalar: sum over rows of the per-row loss (for 'mean'/'sum')."""
    pred, n, c, rt, n_pad = _prepare(pred)
    kernel = functools.partial(
        _fused_sum_kernel, c=c, shift=_resolve_roll_shift(c), inv_c=1.0 / c)
    out = pl.pallas_call(
        kernel,
        out_shape=jax.ShapeDtypeStruct((1, 1), jnp.float32),
        grid=(n_pad // rt,),
        in_specs=[pl.BlockSpec((rt, c), lambda i: (i, 0))],
        out_specs=pl.BlockSpec((1, 1), lambda i: (0, 0)),
        compiler_params=pltpu.CompilerParams(
            dimension_semantics=("arbitrary",),   # resident accumulator output
            vmem_limit_bytes=_VMEM_LIMIT_BYTES),
    )(pred)
    return out[0, 0]


class DifferenceLoss:
    """JAX/Pallas port of mmdet DifferenceLoss (forward pass)."""

    def __init__(self, reduction="mean", loss_weight=1.0):
        self.reduction = reduction
        self.loss_weight = loss_weight

    def __call__(self, pred, target=None, weight=None, avg_factor=None,
                 reduction_override=None):
        assert reduction_override in (None, "none", "mean", "sum")
        reduction = reduction_override if reduction_override else self.reduction
        n = pred.shape[0]

        if reduction in ("mean", "sum") and weight is None:
            # Fully fused path: row mean AND batch reduction happen in-kernel;
            # only a scalar leaves the chip.
            total = _difference_loss_total(pred)
            if reduction == "mean":
                denom = float(n) if avg_factor is None else avg_factor
                loss = total / denom
            else:
                loss = total
        else:
            # Per-row path ('none' reduction, or per-row weighting), then the
            # cheap O(N) weighted_loss glue in plain JAX.
            loss = _difference_loss_rows(pred)
            if weight is not None:
                loss = loss * weight
            if reduction == "mean":
                loss = (jnp.mean(loss) if avg_factor is None
                        else jnp.sum(loss) / avg_factor)
            elif reduction == "sum":
                loss = jnp.sum(loss)
        return self.loss_weight * loss


def _reference_rows(pred):
    pred_last = jnp.concatenate([pred[:, 1:], pred[:, :1]], axis=1)
    return (jnp.abs(pred - pred_last) / pred_last).mean(axis=1)


if __name__ == "__main__":
    key = jax.random.PRNGKey(0)
    N, C = 16, 8
    # Keep values away from zero: the op divides by the rolled prediction.
    pred = jax.random.uniform(key, (N, C), dtype=jnp.float32,
                              minval=0.5, maxval=1.5)
    weight = jnp.linspace(0.5, 1.5, N, dtype=jnp.float32)

    rows_ref = _reference_rows(pred)

    loss_mod = DifferenceLoss(reduction="mean", loss_weight=1.0)

    out_mean = jax.block_until_ready(loss_mod(pred))                    # fused kernel
    out_none = jax.block_until_ready(
        loss_mod(pred, reduction_override="none"))                      # per-row kernel
    out_wsum = jax.block_until_ready(
        loss_mod(pred, weight=weight, reduction_override="sum"))        # per-row + weight

    assert jnp.allclose(out_mean, rows_ref.mean(), rtol=1e-5, atol=1e-5), \
        (out_mean, rows_ref.mean())
    assert jnp.allclose(out_none, rows_ref, rtol=1e-5, atol=1e-5)
    assert jnp.allclose(out_wsum, (rows_ref * weight).sum(),
                        rtol=1e-5, atol=1e-5), (out_wsum, (rows_ref * weight).sum())

    print("KERNEL_OK")
</pallas_src>

<mosaic_0001>
module attributes {stable_mosaic.version = 11 : i64} {
  func.func @probe_kernel(%arg0: memref<8x8xf32, #tpu.memory_space<vmem>>, %arg1: memref<8x8xf32, #tpu.memory_space<vmem>>) attributes {dimension_semantics = [], scalar_prefetch = 0 : i64, scratch_operands = 0 : i64, tpu.core_type = #tpu.core_type<tc>} {
    %c0 = arith.constant 0 : index
    %c0_0 = arith.constant 0 : index
    %0 = vector.load %arg0[%c0, %c0_0] : memref<8x8xf32, #tpu.memory_space<vmem>>, vector<8x8xf32>
    %c1_i32 = arith.constant 1 : i32
    %1 = tpu.dynamic_rotate %0 by %c1_i32 dim 1 : vector<8x8xf32>, i32 -> vector<8x8xf32>
    %c0_1 = arith.constant 0 : index
    %c0_2 = arith.constant 0 : index
    %2 = vector.load %arg1[%c0_1, %c0_2] : memref<8x8xf32, #tpu.memory_space<vmem>>, vector<8x8xf32>
    tpu.vector_store %arg1[%c0_1, %c0_2], %1 {strides = array<i32>} : memref<8x8xf32, #tpu.memory_space<vmem>>, vector<8x8xf32>,
    return
  }
}

module attributes {stable_mosaic.version = 11 : i64} {
  func.func @_fused_sum_kernel(%arg0: i32, %arg1: memref<16x8xf32, #tpu.memory_space<vmem>>, %arg2: memref<1x1xf32, #tpu.memory_space<vmem>>) attributes {dimension_semantics = [#tpu.dimension_semantics<arbitrary>], iteration_bounds = array<i64: 1>, scalar_prefetch = 0 : i64, scratch_operands = 0 : i64, tpu.core_type = #tpu.core_type<tc>, window_params = [{transform_indices = @transform_0, window_bounds = array<i64: 16, 8>}, {pipeline_mode = #tpu.pipeline_mode<synchronous>, transform_indices = @transform_1, window_bounds = array<i64: 1, 1>}]} {
    %c0_i32 = arith.constant 0 : i32
    %0 = arith.cmpi eq, %arg0, %c0_i32 : i32
    %1 = arith.extui %0 : i1 to i32
    %c0_i32_0 = arith.constant 0 : i32
    %2 = arith.cmpi ne, %1, %c0_i32_0 : i32
    scf.if %2 {
      %cst_8 = arith.constant 0.000000e+00 : f32
      %20 = vector.broadcast %cst_8 : f32 to vector<1x1xf32>
      %c0_9 = arith.constant 0 : index
      %c0_10 = arith.constant 0 : index
      %21 = vector.load %arg2[%c0_9, %c0_10] : memref<1x1xf32, #tpu.memory_space<vmem>>, vector<1x1xf32>
      tpu.vector_store %arg2[%c0_9, %c0_10], %20 {strides = array<i32>} : memref<1x1xf32, #tpu.memory_space<vmem>>, vector<1x1xf32>,
    } else {
    }
    %c0 = arith.constant 0 : index
    %c0_1 = arith.constant 0 : index
    %3 = vector.load %arg1[%c0, %c0_1] : memref<16x8xf32, #tpu.memory_space<vmem>>, vector<16x8xf32>
    %4 = vector.extract_strided_slice %3 {offsets = [0, 1], sizes = [16, 7], strides = [1, 1]} : vector<16x8xf32> to vector<16x7xf32>
    %5 = vector.extract_strided_slice %3 {offsets = [0, 0], sizes = [16, 1], strides = [1, 1]} : vector<16x8xf32> to vector<16x1xf32>
    %6 = tpu.concatenate %4, %5 in 1 : vector<16x7xf32>, vector<16x1xf32> -> vector<16x8xf32>
    %7 = arith.subf %3, %6 : vector<16x8xf32>
    %8 = math.absf %7 : vector<16x8xf32>
    %9 = tpu.reciprocal %6 : vector<16x8xf32> -> vector<16x8xf32>
    %10 = arith.mulf %8, %9 : vector<16x8xf32>
    %cst = arith.constant dense<0.000000e+00> : vector<16xf32>
    %11 = vector.multi_reduction <add>, %10, %cst [1] : vector<16x8xf32> to vector<16xf32>
    %12 = vector.shape_cast %11 : vector<16xf32> to vector<16x1xf32>
    %c0_2 = arith.constant 0 : index
    %c0_3 = arith.constant 0 : index
    %13 = vector.load %arg2[%c0_2, %c0_3] : memref<1x1xf32, #tpu.memory_space<vmem>>, vector<1x1xf32>
    %cst_4 = arith.constant dense<0.000000e+00> : vector<1xf32>
    %14 = vector.multi_reduction <add>, %12, %cst_4 [0] : vector<16x1xf32> to vector<1xf32>
    %15 = vector.shape_cast %14 : vector<1xf32> to vector<1x1xf32>
    %cst_5 = arith.constant 1.250000e-01 : f32
    %16 = vector.broadcast %cst_5 : f32 to vector<1x1xf32>
    %17 = arith.mulf %15, %16 : vector<1x1xf32>
    %18 = arith.addf %13, %17 : vector<1x1xf32>
    %c0_6 = arith.constant 0 : index
    %c0_7 = arith.constant 0 : index
    %19 = vector.load %arg2[%c0_6, %c0_7] : memref<1x1xf32, #tpu.memory_space<vmem>>, vector<1x1xf32>
    tpu.vector_store %arg2[%c0_6, %c0_7], %18 {strides = array<i32>} : memref<1x1xf32, #tpu.memory_space<vmem>>, vector<1x1xf32>,
    return
  }
  func.func @transform_0(%arg0: i32) -> (i32, i32) {
    %c0_i32 = arith.constant 0 : i32
    %c0_i32_0 = arith.constant 0 : i32
    return %arg0, %c0_i32 : i32, i32
  }
  func.func @transform_1(%arg0: i32) -> (i32, i32) {
    %c0_i32 = arith.constant 0 : i32
    %c0_i32_0 = arith.constant 0 : i32
    %c0_i32_1 = arith.constant 0 : i32
    return %c0_i32, %c0_i32_0 : i32, i32
  }
}

</mosaic_0001>

<llo_original>
// kernel: tpu_custom_call.1
$region0: #{tpu_custom_call.1}
  #allocation0 [shape = 'u32[]', space=smem, size = 0x4, offset = 0x4, fixed_abs, tag = 'smem constant byte address 0x4 - core index']
  #allocation1 [shape = 'u32[144,128]{1,0:T(1,128)}', space=vmem, size = 0x12000, scoped, tag = 'internal scratch']
  %s0 = inlined_call_operand.hbm [shape: f32[8,8], index: 0, kind: input, shape index: {}]
  %s1 = inlined_call_operand.hbm [shape: f32[8,8], index: 1, kind: output, shape index: {}]
  %s2 = sld [smem:[#allocation0]]
  $region18: #{tpu_custom_call.1} parent=0
    _
  %s4 = ssub.s32 1, %s2
  %s5 = scalar_select 0, %s4, %s2
  $region1: #{tpu_custom_call.1} parent=0
    #allocation2 [shape = 'u8[4096]{0}', space=vmem, size = 0x1000, scoped, tag = 'input window, operand 0, single buffered']
    #allocation3 [shape = 's32[1]{0}', space=sflag, size = 0x4, scoped, tag = 'scoped memory for tpu_custom_call.1']
    #allocation4 [shape = 's32[1]{0}', space=sflag, size = 0x4, scoped, tag = 'scoped memory for tpu_custom_call.1']
    #allocation5 [shape = 'u8[4096]{0}', space=vmem, size = 0x1000, scoped, tag = 'output window, operand 0, single buffered']
    %6 = vsyncpa [#allocation3], 0
    %7 = vsyncpa [#allocation4], 0
    // Predicated region
    $region2: #{tpu_custom_call.1} parent=1 // pred_check
      _
    $region3: #{tpu_custom_call.1} parent=1 // pred_check_branch
      %9 = sbr.rel (0) target = $region5
    $region4: #{tpu_custom_call.1} parent=1 // pred_region
      %s11 = ssub.s32 128, 128
      %12 = vsyncadd [#allocation3], %s11
      %s14 = sshll.u32 [#allocation2], 4
      %s15 = int_to_ptr.vmem [resolvable:$true] %s14
      %17 = dma.hbm_to_vmem [thread:$0]  %s0, 128, %s15, [#allocation3]
    $region5: #{tpu_custom_call.1} parent=1 // pred_fallthru
      _
    // Predicated region
    $region6: #{tpu_custom_call.1} parent=1 // pred_check
      _
    $region7: #{tpu_custom_call.1} parent=1 // pred_check_branch
      %19 = sbr.rel (0) target = $region9
    $region8: #{tpu_custom_call.1} parent=1 // pred_region
      %20 = dma.done [#allocation3], 128
    $region9: #{tpu_custom_call.1} parent=1 // pred_fallthru
      _
    %v21 = vld [vmem:[#allocation2] sm:$0xff]
    %vm22 = vcmask 1047616
    %23 = vrot.lane.b32.xlu0 %v21, 8
    %v24 = vpop.permute.xlu0 %23
    %v25 = vsel %vm22, %v24, %v21
    %26 = vrot.lane.b32.xlu0 %v25, 8
    %v27 = vpop.permute.xlu0 %26
    %v28 = vsel %vm22, %v27, %v21
    %30 = vrot.lane.b32.xlu0 %v28, 121
    %v31 = vpop.permute.xlu0 %30
    %vm33 = vcmask 64512
    %34 = vst.msk [vmem:[#allocation5] sm:$0xff] %vm33, %v31
    // Predicated region
    $region10: #{tpu_custom_call.1} parent=1 // pred_check
      _
    $region11: #{tpu_custom_call.1} parent=1 // pred_check_branch
      %36 = sbr.rel (0) target = $region13
    $region12: #{tpu_custom_call.1} parent=1 // pred_region
      %s38 = ssub.s32 128, 128
      %39 = vsyncadd [#allocation4], %s38
      %s41 = sshll.u32 [#allocation5], 4
      %s42 = int_to_ptr.vmem [resolvable:$true] %s41
      %44 = dma.vmem_to_hbm [thread:$0]  %s42, 128, %s1, [#allocation4]
    $region13: #{tpu_custom_call.1} parent=1 // pred_fallthru
      _
    // Predicated region
    $region14: #{tpu_custom_call.1} parent=1 // pred_check
      _
    $region15: #{tpu_custom_call.1} parent=1 // pred_check_branch
      %46 = sbr.rel (0) target = $region17
    $region16: #{tpu_custom_call.1} parent=1 // pred_region
      %47 = dma.done [#allocation4], 128
    $region17: #{tpu_custom_call.1} parent=1 // pred_fallthru
      _
    %48 = vsyncpa [#allocation3], 1
    %49 = vsyncpa [#allocation4], 1

// kernel: tpu_custom_call.1
$region0: #{tpu_custom_call.1}
  #allocation0 [shape = 'u32[]', space=smem, size = 0x4, offset = 0x4, fixed_abs, tag = 'smem constant byte address 0x4 - core index']
  #allocation1 [shape = 'u32[144,128]{1,0:T(1,128)}', space=vmem, size = 0x12000, scoped, tag = 'internal scratch']
  %s0 = inlined_call_operand.vmem [shape: f32[16,8], index: 0, kind: input, shape index: {}]
  %s1 = inlined_call_operand.hbm [shape: f32[1,1], index: 1, kind: output, shape index: {}]
  %s2 = sld [smem:[#allocation0]]
  $region18: #{tpu_custom_call.1} parent=0
    _
  %s4 = ssub.s32 1, %s2
  %s5 = scalar_select 0, %s4, %s2
  $region1: #{tpu_custom_call.1} parent=0
    #allocation2 [shape = 'u8[512]{0}', space=vmem, size = 0x400, scoped, tag = 'output window, operand 0, single buffered']
    #allocation3 [shape = 's32[1]{0}', space=sflag, size = 0x4, scoped, tag = 'scoped memory for tpu_custom_call.1']
    %6 = vsyncpa [#allocation3], 0
    // Predicated region
    $region2: #{tpu_custom_call.1} parent=1 // pred_check
      _
    $region3: #{tpu_custom_call.1} parent=1 // pred_check_branch
      %8 = sbr.rel (0) target = $region5
    $region4: #{tpu_custom_call.1} parent=1 // pred_region
      _
    $region5: #{tpu_custom_call.1} parent=1 // pred_fallthru
      _
    %p9 = scmp.eq.s32.totalorder 0, 0
    // Predicated region
    $region6: #{tpu_custom_call.1} parent=1 // pred_check
      %p10 = pneg %p9
    $region7: #{tpu_custom_call.1} parent=1 // pred_check_branch
      %12 = sbr.rel (%p10) target = $region9
    $region8: #{tpu_custom_call.1} parent=1 // pred_region
      %vm13 = vcmask 0
      %14 = vst.msk [vmem:[#allocation2] sm:$0x1] %vm13, 0.0
    $region9: #{tpu_custom_call.1} parent=1 // pred_fallthru
      _
    %v15 = vld [vmem:[%s0] sm:$0xff]
    %v16 = vld [vmem:[%s0 + $0x8] sm:$0xff]
    %19 = vrot.lane.b32.xlu0 %v15, 127
    %v20 = vpop.permute.xlu0 %19
    %21 = vrot.lane.b32.xlu0 %v16, 127
    %v22 = vpop.permute.xlu0 %21
    %25 = vrot.lane.b32.xlu0 %v15, 7
    %v26 = vpop.permute.xlu0 %25
    %27 = vrot.lane.b32.xlu0 %v16, 7
    %v28 = vpop.permute.xlu0 %27
    %vm31 = vcmask 56320
    %v32 = vsel %vm31, %v20, %v26
    %v33 = vsel %vm31, %v22, %v28
    %v34 = vsub.f32 %v15, %v32
    %v35 = vsub.f32 %v16, %v33
    %v36 = vand.u32 2147483647, %v34
    %v37 = vand.u32 2147483647, %v35
    %v38 = vrcp.pop %v32
    %v39 = vrcp.pop %v33
    %v40 = vmul.f32 %v36, %v38
    %v41 = vmul.f32 %v37, %v39
    %vm42 = vcmask 64512
    %v43 = vsel %vm42, %v40, 0.0
    %44 = vadd.xlane.f32.xlu0 %v43
    %v45 = vpop.xlane.xlu0 %44
    %v46 = vsel %vm42, %v41, 0.0
    %47 = vadd.xlane.f32.xlu0 %v46
    %v48 = vpop.xlane.xlu0 %47
    %v49 = vld [vmem:[#allocation2] sm:$0x1]
    %v50 = vadd.f32 %v45, %v48
    %v51 = vrot.slane %v50, 4
    %v52 = vadd.f32 %v50, %v51
    %v53 = vrot.slane %v52, 2
    %v54 = vadd.f32 %v52, %v53
    %v55 = vrot.slane %v54, 1
    %v56 = vadd.f32 %v54, %v55
    %v57 = vmul.f32 %v56, 0.125
    %v58 = vadd.f32 %v49, %v57
    %vm59 = vcmask 0
    %60 = vst.msk [vmem:[#allocation2] sm:$0x1] %vm59, %v58
    // Predicated region
    $region10: #{tpu_custom_call.1} parent=1 // pred_check
      _
    $region11: #{tpu_custom_call.1} parent=1 // pred_check_branch
      %62 = sbr.rel (0) target = $region13
    $region12: #{tpu_custom_call.1} parent=1 // pred_region
      %s64 = ssub.s32 16, 16
      %65 = vsyncadd [#allocation3], %s64
      %s67 = sshll.u32 [#allocation2], 4
      %s68 = int_to_ptr.vmem [resolvable:$true] %s67
      %70 = dma.vmem_to_hbm [thread:$0]  %s68, 16, %s1, [#allocation3]
    $region13: #{tpu_custom_call.1} parent=1 // pred_fallthru
      _
    // Predicated region
    $region14: #{tpu_custom_call.1} parent=1 // pred_check
      _
    $region15: #{tpu_custom_call.1} parent=1 // pred_check_branch
      %72 = sbr.rel (0) target = $region17
    $region16: #{tpu_custom_call.1} parent=1 // pred_region
      %73 = dma.done [#allocation3], 16
    $region17: #{tpu_custom_call.1} parent=1 // pred_fallthru
      _
    %74 = vsyncpa [#allocation3], 1

</llo_original>
